<compile_context>
chip_gen: v5e
topology: v5e:2x2
jax: 0.10.0
libtpu: 0.0.40
codegen_flags: <defaults>
</compile_context>

<pallas_src>
import jax
import jax.numpy as jnp
from jax.experimental import pallas as pl
from jax.experimental.pallas import tpu as pltpu

IN_FEATURES = 784   # 1 * 28 * 28
HIDDEN = 100
OUT_FEATURES = 10

TB_CAP = 256        # batch-tile cap (multiple of 8); ~0.8 MiB x-tile per buffer


def _round_up(n, m):
    return ((n + m - 1) // m) * m


def _cdiv(a, b):
    return (a + b - 1) // b


def _mlp_kernel(x_ref, w1_ref, b1_ref, w2_ref, b2_ref, o_ref):
    # fc1: (TB, 784) f32 @ (784, 100) f32 -> f32 accumulation on the MXU
    h = jnp.dot(x_ref[...], w1_ref[...], preferred_element_type=jnp.float32)
    # bias + ReLU on the VPU (f32 everywhere -> exact parity with PyTorch math)
    h = jnp.maximum(h + b1_ref[...], 0.0)
    # fc2: (TB, 100) @ (100, 10) -> (TB, 10), fc2 bias fused here
    out = jnp.dot(h, w2_ref[...], preferred_element_type=jnp.float32)
    o_ref[...] = (out + b2_ref[...]).astype(o_ref.dtype)


@jax.jit
def network_forward(x, w1, b1, w2, b2):
    """x: (B, 1, 28, 28) float32 NCHW (like PyTorch). Returns (B, 10) f32 logits.

    Weights are stored as (in_features, out_features); math matches the PyTorch
    module's forward exactly (all f32).
    """
    B = x.shape[0]
    x2d = x.reshape(B, -1).astype(jnp.float32)           # x.view(x.shape[0], -1)

    # Batch tile: ~B/n_tiles rounded up to 8 sublanes, capped at TB_CAP.
    # Keeps padding waste to <= ~8 rows per tile and gives grid_b >= 2 once
    # B > TB_CAP (megacore sharding on v7x + double-buffered DMA overlap).
    n_tiles = max(1, _cdiv(B, TB_CAP))
    tb = min(TB_CAP, _round_up(_cdiv(B, n_tiles), 8))
    Bp = _round_up(B, tb)
    grid_b = Bp // tb
    if Bp != B:   # only a handful of rows thanks to the tile choice above
        x2d = jnp.pad(x2d, ((0, Bp - B), (0, 0)))

    w1f = w1.astype(jnp.float32)
    w2f = w2.astype(jnp.float32)
    b1r = b1.astype(jnp.float32).reshape(1, HIDDEN)
    b2r = b2.astype(jnp.float32).reshape(1, OUT_FEATURES)

    flops = 2 * Bp * (IN_FEATURES * HIDDEN + HIDDEN * OUT_FEATURES)
    bytes_accessed = 4 * (Bp * IN_FEATURES          # streamed x
                          + IN_FEATURES * HIDDEN + HIDDEN         # resident fc1
                          + HIDDEN * OUT_FEATURES + OUT_FEATURES  # resident fc2
                          + Bp * OUT_FEATURES)      # output

    out = pl.pallas_call(
        _mlp_kernel,
        out_shape=jax.ShapeDtypeStruct((Bp, OUT_FEATURES), jnp.float32),
        grid=(grid_b,),
        in_specs=[
            pl.BlockSpec((tb, IN_FEATURES), lambda i: (i, 0)),        # x: streamed per tile
            pl.BlockSpec((IN_FEATURES, HIDDEN), lambda i: (0, 0)),    # w1: VMEM-resident
            pl.BlockSpec((1, HIDDEN), lambda i: (0, 0)),              # b1: resident
            pl.BlockSpec((HIDDEN, OUT_FEATURES), lambda i: (0, 0)),   # w2: resident
            pl.BlockSpec((1, OUT_FEATURES), lambda i: (0, 0)),        # b2: resident
        ],
        out_specs=pl.BlockSpec((tb, OUT_FEATURES), lambda i: (i, 0)),
        compiler_params=pltpu.CompilerParams(
            dimension_semantics=("parallel",),   # shard batch tiles over TCs (v7x)
        ),
        cost_estimate=pl.CostEstimate(
            flops=flops, transcendentals=0, bytes_accessed=bytes_accessed),
    )(x2d, w1f, b1r, w2f, b2r)

    return out[:B]   # drop the (tiny) batch padding only


def init_params(key):
    """Deterministic Xavier-uniform init for both Linear layers."""
    k1, k2 = jax.random.split(key, 2)

    def xavier(key, fan_in, fan_out):
        limit = jnp.sqrt(6.0 / (fan_in + fan_out))
        return jax.random.uniform(
            key, (fan_in, fan_out), dtype=jnp.float32, minval=-limit, maxval=limit
        )

    w1 = xavier(k1, IN_FEATURES, HIDDEN)          # stored as (in, out)
    b1 = jnp.zeros((HIDDEN,), jnp.float32)
    w2 = xavier(k2, HIDDEN, OUT_FEATURES)
    b2 = jnp.zeros((OUT_FEATURES,), jnp.float32)
    return w1, b1, w2, b2


def _reference_f32(x, w1, b1, w2, b2):
    """Pure-JAX mirror of the PyTorch module's forward."""
    x2d = x.reshape(x.shape[0], -1)
    h = jnp.maximum(x2d @ w1 + b1, 0.0)
    return h @ w2 + b2


if __name__ == "__main__":
    key = jax.random.PRNGKey(0)
    kx, kp = jax.random.split(key)

    B = 2
    x = jax.random.normal(kx, (B, 1, 28, 28), dtype=jnp.float32)  # NCHW like PyTorch
    w1, b1, w2, b2 = init_params(kp)

    out = network_forward(x, w1, b1, w2, b2)
    out = jax.block_until_ready(out)

    assert out.shape == (B, OUT_FEATURES)
    ref = _reference_f32(x, w1, b1, w2, b2)
    assert jnp.allclose(out, ref, atol=1e-3, rtol=1e-3)

    print("KERNEL_OK")
</pallas_src>

<mosaic_0001>
module attributes {stable_mosaic.version = 11 : i64} {
  func.func @_mlp_kernel(%arg0: i32, %arg1: memref<8x784xf32, #tpu.memory_space<vmem>>, %arg2: memref<784x100xf32, #tpu.memory_space<vmem>>, %arg3: memref<1x100xf32, #tpu.memory_space<vmem>>, %arg4: memref<100x10xf32, #tpu.memory_space<vmem>>, %arg5: memref<1x10xf32, #tpu.memory_space<vmem>>, %arg6: memref<8x10xf32, #tpu.memory_space<vmem>>) attributes {dimension_semantics = [#tpu.dimension_semantics<parallel>], iteration_bounds = array<i64: 1>, scalar_prefetch = 0 : i64, scratch_operands = 0 : i64, tpu.core_type = #tpu.core_type<tc>, window_params = [{transform_indices = @transform_0, window_bounds = array<i64: 8, 784>}, {pipeline_mode = #tpu.pipeline_mode<synchronous>, transform_indices = @transform_1, window_bounds = array<i64: 784, 100>}, {pipeline_mode = #tpu.pipeline_mode<synchronous>, transform_indices = @transform_2, window_bounds = array<i64: 1, 100>}, {pipeline_mode = #tpu.pipeline_mode<synchronous>, transform_indices = @transform_3, window_bounds = array<i64: 100, 10>}, {pipeline_mode = #tpu.pipeline_mode<synchronous>, transform_indices = @transform_4, window_bounds = array<i64: 1, 10>}, {transform_indices = @transform_5, window_bounds = array<i64: 8, 10>}]} {
    %c0 = arith.constant 0 : index
    %c0_0 = arith.constant 0 : index
    %0 = vector.load %arg1[%c0, %c0_0] : memref<8x784xf32, #tpu.memory_space<vmem>>, vector<8x784xf32>
    %c0_1 = arith.constant 0 : index
    %c0_2 = arith.constant 0 : index
    %1 = vector.load %arg2[%c0_1, %c0_2] : memref<784x100xf32, #tpu.memory_space<vmem>>, vector<784x100xf32>
    %cst = arith.constant dense<0.000000e+00> : vector<8x100xf32>
    %2 = tpu.matmul %0, %1, %cst {dimension_numbers = #tpu.dot_dimension_numbers<[1], [0], [0], [1], [0, 0, 1, 1], [], []>} : vector<8x784xf32>, vector<784x100xf32>, vector<8x100xf32> -> vector<8x100xf32>
    %c0_3 = arith.constant 0 : index
    %c0_4 = arith.constant 0 : index
    %3 = vector.load %arg3[%c0_3, %c0_4] : memref<1x100xf32, #tpu.memory_space<vmem>>, vector<1x100xf32>
    %4 = vector.broadcast %3 : vector<1x100xf32> to vector<8x100xf32>
    %5 = arith.addf %2, %4 : vector<8x100xf32>
    %cst_5 = arith.constant 0.000000e+00 : f32
    %6 = vector.broadcast %cst_5 : f32 to vector<8x100xf32>
    %7 = arith.maximumf %5, %6 : vector<8x100xf32>
    %c0_6 = arith.constant 0 : index
    %c0_7 = arith.constant 0 : index
    %8 = vector.load %arg4[%c0_6, %c0_7] : memref<100x10xf32, #tpu.memory_space<vmem>>, vector<100x10xf32>
    %cst_8 = arith.constant dense<0.000000e+00> : vector<8x10xf32>
    %9 = tpu.matmul %7, %8, %cst_8 {dimension_numbers = #tpu.dot_dimension_numbers<[1], [0], [0], [1], [0, 0, 1, 1], [], []>} : vector<8x100xf32>, vector<100x10xf32>, vector<8x10xf32> -> vector<8x10xf32>
    %c0_9 = arith.constant 0 : index
    %c0_10 = arith.constant 0 : index
    %10 = vector.load %arg5[%c0_9, %c0_10] : memref<1x10xf32, #tpu.memory_space<vmem>>, vector<1x10xf32>
    %11 = vector.broadcast %10 : vector<1x10xf32> to vector<8x10xf32>
    %12 = arith.addf %9, %11 : vector<8x10xf32>
    %c0_11 = arith.constant 0 : index
    %c0_12 = arith.constant 0 : index
    %13 = vector.load %arg6[%c0_11, %c0_12] : memref<8x10xf32, #tpu.memory_space<vmem>>, vector<8x10xf32>
    tpu.vector_store %arg6[%c0_11, %c0_12], %12 {strides = array<i32>} : memref<8x10xf32, #tpu.memory_space<vmem>>, vector<8x10xf32>,
    return
  }
  func.func @transform_0(%arg0: i32) -> (i32, i32) {
    %c0_i32 = arith.constant 0 : i32
    %c0_i32_0 = arith.constant 0 : i32
    return %arg0, %c0_i32 : i32, i32
  }
  func.func @transform_1(%arg0: i32) -> (i32, i32) {
    %c0_i32 = arith.constant 0 : i32
    %c0_i32_0 = arith.constant 0 : i32
    %c0_i32_1 = arith.constant 0 : i32
    return %c0_i32, %c0_i32_0 : i32, i32
  }
  func.func @transform_2(%arg0: i32) -> (i32, i32) {
    %c0_i32 = arith.constant 0 : i32
    %c0_i32_0 = arith.constant 0 : i32
    %c0_i32_1 = arith.constant 0 : i32
    return %c0_i32, %c0_i32_0 : i32, i32
  }
  func.func @transform_3(%arg0: i32) -> (i32, i32) {
    %c0_i32 = arith.constant 0 : i32
    %c0_i32_0 = arith.constant 0 : i32
    %c0_i32_1 = arith.constant 0 : i32
    return %c0_i32, %c0_i32_0 : i32, i32
  }
  func.func @transform_4(%arg0: i32) -> (i32, i32) {
    %c0_i32 = arith.constant 0 : i32
    %c0_i32_0 = arith.constant 0 : i32
    %c0_i32_1 = arith.constant 0 : i32
    return %c0_i32, %c0_i32_0 : i32, i32
  }
  func.func @transform_5(%arg0: i32) -> (i32, i32) {
    %c0_i32 = arith.constant 0 : i32
    %c0_i32_0 = arith.constant 0 : i32
    return %arg0, %c0_i32 : i32, i32
  }
}

</mosaic_0001>

<llo_original>
// kernel: network_forward.1
$region0: #{network_forward.1}
  #allocation0 [shape = 'u32[]', space=smem, size = 0x4, offset = 0x4, fixed_abs, tag = 'smem constant byte address 0x4 - core index']
  #allocation1 [shape = 'u32[72,128]{1,0:T(1,128)}', space=vmem, size = 0x9000, scoped, tag = 'internal scratch']
  %s0 = inlined_call_operand.vmem [shape: f32[8,784], index: 0, kind: input, shape index: {}]
  %s1 = inlined_call_operand.vmem [shape: f32[784,100], index: 1, kind: input, shape index: {}]
  %s2 = inlined_call_operand.vmem [shape: f32[1,100], index: 2, kind: input, shape index: {}]
  %s3 = inlined_call_operand.vmem [shape: f32[100,10], index: 3, kind: input, shape index: {}]
  %s4 = inlined_call_operand.vmem [shape: f32[1,10], index: 4, kind: input, shape index: {}]
  %s5 = inlined_call_operand.vmem [shape: f32[8,10], index: 5, kind: output, shape index: {}]
  %s6 = sld [smem:[#allocation0]]
  $region30: #{network_forward.1} parent=0
    _
  %s8 = ssub.s32 1, %s6
  %s9 = scalar_select 0, %s8, %s6
  // Predicated region
  $region2: #{network_forward.1} parent=0 // pred_check
    _
  $region3: #{network_forward.1} parent=0 // pred_check_branch
    %11 = sbr.rel (0) target = $region5
  $region4: #{network_forward.1} parent=0 // pred_region
    _
  $region5: #{network_forward.1} parent=0 // pred_fallthru
    _
  // Predicated region
  $region6: #{network_forward.1} parent=0 // pred_check
    _
  $region7: #{network_forward.1} parent=0 // pred_check_branch
    %13 = sbr.rel (0) target = $region9
  $region8: #{network_forward.1} parent=0 // pred_region
    _
  $region9: #{network_forward.1} parent=0 // pred_fallthru
    _
  // Predicated region
  $region10: #{network_forward.1} parent=0 // pred_check
    _
  $region11: #{network_forward.1} parent=0 // pred_check_branch
    %15 = sbr.rel (0) target = $region13
  $region12: #{network_forward.1} parent=0 // pred_region
    _
  $region13: #{network_forward.1} parent=0 // pred_fallthru
    _
  // Predicated region
  $region14: #{network_forward.1} parent=0 // pred_check
    _
  $region15: #{network_forward.1} parent=0 // pred_check_branch
    %17 = sbr.rel (0) target = $region17
  $region16: #{network_forward.1} parent=0 // pred_region
    _
  $region17: #{network_forward.1} parent=0 // pred_fallthru
    _
  // Predicated region
  $region18: #{network_forward.1} parent=0 // pred_check
    _
  $region19: #{network_forward.1} parent=0 // pred_check_branch
    %19 = sbr.rel (0) target = $region21
  $region20: #{network_forward.1} parent=0 // pred_region
    _
  $region21: #{network_forward.1} parent=0 // pred_fallthru
    _
  %v20 = vld [vmem:[%s0] sm:$0xff]
  %v21 = vld [vmem:[%s0 + $0x8] sm:$0xff]
  %v22 = vld [vmem:[%s0 + $0x10] sm:$0xff]
  %v23 = vld [vmem:[%s0 + $0x18] sm:$0xff]
  %v24 = vld [vmem:[%s0 + $0x20] sm:$0xff]
  %v25 = vld [vmem:[%s0 + $0x28] sm:$0xff]
  %v26 = vld [vmem:[%s0 + $0x30] sm:$0xff]
  %v27 = vld [vmem:[%s1] sm:$0xff]
  %v28 = vld [vmem:[%s1 + $0x8] sm:$0xff]
  %v29 = vld [vmem:[%s1 + $0x10] sm:$0xff]
  %v30 = vld [vmem:[%s1 + $0x18] sm:$0xff]
  %v31 = vld [vmem:[%s1 + $0x20] sm:$0xff]
  %v32 = vld [vmem:[%s1 + $0x28] sm:$0xff]
  %v33 = vld [vmem:[%s1 + $0x30] sm:$0xff]
  %v34 = vld [vmem:[%s1 + $0x38] sm:$0xff]
  %v35 = vld [vmem:[%s1 + $0x40] sm:$0xff]
  %v36 = vld [vmem:[%s1 + $0x48] sm:$0xff]
  %v37 = vld [vmem:[%s1 + $0x50] sm:$0xff]
  %v38 = vld [vmem:[%s1 + $0x58] sm:$0xff]
  %v39 = vld [vmem:[%s1 + $0x60] sm:$0xff]
  %v40 = vld [vmem:[%s1 + $0x68] sm:$0xff]
  %v41 = vld [vmem:[%s1 + $0x70] sm:$0xff]
  %v42 = vld [vmem:[%s1 + $0x78] sm:$0xff]
  %v43 = vld [vmem:[%s1 + $0x80] sm:$0xff]
  %v44 = vld [vmem:[%s1 + $0x88] sm:$0xff]
  %v45 = vld [vmem:[%s1 + $0x90] sm:$0xff]
  %v46 = vld [vmem:[%s1 + $0x98] sm:$0xff]
  %v47 = vld [vmem:[%s1 + $0xa0] sm:$0xff]
  %v48 = vld [vmem:[%s1 + $0xa8] sm:$0xff]
  %v49 = vld [vmem:[%s1 + $0xb0] sm:$0xff]
  %v50 = vld [vmem:[%s1 + $0xb8] sm:$0xff]
  %v51 = vld [vmem:[%s1 + $0xc0] sm:$0xff]
  %v52 = vld [vmem:[%s1 + $0xc8] sm:$0xff]
  %v53 = vld [vmem:[%s1 + $0xd0] sm:$0xff]
  %v54 = vld [vmem:[%s1 + $0xd8] sm:$0xff]
  %v55 = vld [vmem:[%s1 + $0xe0] sm:$0xff]
  %v56 = vld [vmem:[%s1 + $0xe8] sm:$0xff]
  %v57 = vld [vmem:[%s1 + $0xf0] sm:$0xff]
  %v58 = vld [vmem:[%s1 + $0xf8] sm:$0xff]
  %v59 = vld [vmem:[%s1 + $0x100] sm:$0xff]
  %v60 = vld [vmem:[%s1 + $0x108] sm:$0xff]
  %v61 = vld [vmem:[%s1 + $0x110] sm:$0xff]
  %v62 = vld [vmem:[%s1 + $0x118] sm:$0xff]
  %v63 = vld [vmem:[%s1 + $0x120] sm:$0xff]
  %v64 = vld [vmem:[%s1 + $0x128] sm:$0xff]
  %v65 = vld [vmem:[%s1 + $0x130] sm:$0xff]
  %v66 = vld [vmem:[%s1 + $0x138] sm:$0xff]
  %v67 = vld [vmem:[%s1 + $0x140] sm:$0xff]
  %v68 = vld [vmem:[%s1 + $0x148] sm:$0xff]
  %v69 = vld [vmem:[%s1 + $0x150] sm:$0xff]
  %v70 = vld [vmem:[%s1 + $0x158] sm:$0xff]
  %v71 = vld [vmem:[%s1 + $0x160] sm:$0xff]
  %v72 = vld [vmem:[%s1 + $0x168] sm:$0xff]
  %v73 = vld [vmem:[%s1 + $0x170] sm:$0xff]
  %v74 = vld [vmem:[%s1 + $0x178] sm:$0xff]
  %v75 = vld [vmem:[%s1 + $0x180] sm:$0xff]
  %v76 = vld [vmem:[%s1 + $0x188] sm:$0xff]
  %v77 = vld [vmem:[%s1 + $0x190] sm:$0xff]
  %v78 = vld [vmem:[%s1 + $0x198] sm:$0xff]
  %v79 = vld [vmem:[%s1 + $0x1a0] sm:$0xff]
  %v80 = vld [vmem:[%s1 + $0x1a8] sm:$0xff]
  %v81 = vld [vmem:[%s1 + $0x1b0] sm:$0xff]
  %v82 = vld [vmem:[%s1 + $0x1b8] sm:$0xff]
  %v83 = vld [vmem:[%s1 + $0x1c0] sm:$0xff]
  %v84 = vld [vmem:[%s1 + $0x1c8] sm:$0xff]
  %v85 = vld [vmem:[%s1 + $0x1d0] sm:$0xff]
  %v86 = vld [vmem:[%s1 + $0x1d8] sm:$0xff]
  %v87 = vld [vmem:[%s1 + $0x1e0] sm:$0xff]
  %v88 = vld [vmem:[%s1 + $0x1e8] sm:$0xff]
  %v89 = vld [vmem:[%s1 + $0x1f0] sm:$0xff]
  %v90 = vld [vmem:[%s1 + $0x1f8] sm:$0xff]
  %v91 = vld [vmem:[%s1 + $0x200] sm:$0xff]
  %v92 = vld [vmem:[%s1 + $0x208] sm:$0xff]
  %v93 = vld [vmem:[%s1 + $0x210] sm:$0xff]
  %v94 = vld [vmem:[%s1 + $0x218] sm:$0xff]
  %v95 = vld [vmem:[%s1 + $0x220] sm:$0xff]
  %v96 = vld [vmem:[%s1 + $0x228] sm:$0xff]
  %v97 = vld [vmem:[%s1 + $0x230] sm:$0xff]
  %v98 = vld [vmem:[%s1 + $0x238] sm:$0xff]
  %v99 = vld [vmem:[%s1 + $0x240] sm:$0xff]
  %v100 = vld [vmem:[%s1 + $0x248] sm:$0xff]
  %v101 = vld [vmem:[%s1 + $0x250] sm:$0xff]
  %v102 = vld [vmem:[%s1 + $0x258] sm:$0xff]
  %v103 = vld [vmem:[%s1 + $0x260] sm:$0xff]
  %v104 = vld [vmem:[%s1 + $0x268] sm:$0xff]
  %v105 = vld [vmem:[%s1 + $0x270] sm:$0xff]
  %v106 = vld [vmem:[%s1 + $0x278] sm:$0xff]
  %v107 = vld [vmem:[%s1 + $0x280] sm:$0xff]
  %v108 = vld [vmem:[%s1 + $0x288] sm:$0xff]
  %v109 = vld [vmem:[%s1 + $0x290] sm:$0xff]
  %v110 = vld [vmem:[%s1 + $0x298] sm:$0xff]
  %v111 = vld [vmem:[%s1 + $0x2a0] sm:$0xff]
  %v112 = vld [vmem:[%s1 + $0x2a8] sm:$0xff]
  %v113 = vld [vmem:[%s1 + $0x2b0] sm:$0xff]
  %v114 = vld [vmem:[%s1 + $0x2b8] sm:$0xff]
  %v115 = vld [vmem:[%s1 + $0x2c0] sm:$0xff]
  %v116 = vld [vmem:[%s1 + $0x2c8] sm:$0xff]
  %v117 = vld [vmem:[%s1 + $0x2d0] sm:$0xff]
  %v118 = vld [vmem:[%s1 + $0x2d8] sm:$0xff]
  %v119 = vld [vmem:[%s1 + $0x2e0] sm:$0xff]
  %v120 = vld [vmem:[%s1 + $0x2e8] sm:$0xff]
  %v121 = vld [vmem:[%s1 + $0x2f0] sm:$0xff]
  %v122 = vld [vmem:[%s1 + $0x2f8] sm:$0xff]
  %v123 = vld [vmem:[%s1 + $0x300] sm:$0xff]
  %v124 = vld [vmem:[%s1 + $0x308] sm:$0xff]
  %v125 = vld [vmem:[%s2] sm:$0x1]
  %v127 = vperm.slane %v125, 0
  %vm129 = vcmask 130048
  %v131 = vsel %vm129, %v26, 0
  %133 = vmatpush.msra.mxu0 %v42
  %134 = vmatpush.msra.mxu0 %v41
  %135 = vmatpush.msra.mxu0 %v40
  %136 = vmatpush.msra.mxu0 %v39
  %137 = vmatpush.msra.mxu0 %v38
  %138 = vmatpush.msra.mxu0 %v37
  %139 = vmatpush.msra.mxu0 %v36
  %140 = vmatpush.msra.mxu0 %v35
  %141 = vmatpush.msra.mxu0 %v34
  %142 = vmatpush.msra.mxu0 %v33
  %143 = vmatpush.msra.mxu0 %v32
  %144 = vmatpush.msra.mxu0 %v31
  %145 = vmatpush.msra.mxu0 %v30
  %146 = vmatpush.msra.mxu0 %v29
  %147 = vmatpush.msra.mxu0 %v28
  %148 = vmatpush.msra.mxu0 %v27
  %149 = vmatmul.f32.gmra.mxu0 %v20
  %v150 = vpop.f32.mrf.mxu0
  %v151 = vadd.f32 %v127, %v150
  %152 = vdwg.mxu0
  %153 = vmatpush.msra.mxu0 %v58
  %154 = vmatpush.msra.mxu0 %v57
  %155 = vmatpush.msra.mxu0 %v56
  %156 = vmatpush.msra.mxu0 %v55
  %157 = vmatpush.msra.mxu0 %v54
  %158 = vmatpush.msra.mxu0 %v53
  %159 = vmatpush.msra.mxu0 %v52
  %160 = vmatpush.msra.mxu0 %v51
  %161 = vmatpush.msra.mxu0 %v50
  %162 = vmatpush.msra.mxu0 %v49
  %163 = vmatpush.msra.mxu0 %v48
  %164 = vmatpush.msra.mxu0 %v47
  %165 = vmatpush.msra.mxu0 %v46
  %166 = vmatpush.msra.mxu0 %v45
  %167 = vmatpush.msra.mxu0 %v44
  %168 = vmatpush.msra.mxu0 %v43
  %169 = vmatmul.f32.gmra.mxu0 %v21
  %v170 = vpop.f32.mrf.mxu0
  %v171 = vadd.f32 %v151, %v170
  %172 = vdwg.mxu0
  %173 = vmatpush.msra.mxu0 %v74
  %174 = vmatpush.msra.mxu0 %v73
  %175 = vmatpush.msra.mxu0 %v72
  %176 = vmatpush.msra.mxu0 %v71
  %177 = vmatpush.msra.mxu0 %v70
  %178 = vmatpush.msra.mxu0 %v69
  %179 = vmatpush.msra.mxu0 %v68
  %180 = vmatpush.msra.mxu0 %v67
  %181 = vmatpush.msra.mxu0 %v66
  %182 = vmatpush.msra.mxu0 %v65
  %183 = vmatpush.msra.mxu0 %v64
  %184 = vmatpush.msra.mxu0 %v63
  %185 = vmatpush.msra.mxu0 %v62
  %186 = vmatpush.msra.mxu0 %v61
  %187 = vmatpush.msra.mxu0 %v60
  %188 = vmatpush.msra.mxu0 %v59
  %189 = vmatmul.f32.gmra.mxu0 %v22
  %v190 = vpop.f32.mrf.mxu0
  %v191 = vadd.f32 %v171, %v190
  %192 = vdwg.mxu0
  %193 = vmatpush.msra.mxu0 %v90
  %194 = vmatpush.msra.mxu0 %v89
  %195 = vmatpush.msra.mxu0 %v88
  %196 = vmatpush.msra.mxu0 %v87
  %197 = vmatpush.msra.mxu0 %v86
  %198 = vmatpush.msra.mxu0 %v85
  %199 = vmatpush.msra.mxu0 %v84
  %200 = vmatpush.msra.mxu0 %v83
  %201 = vmatpush.msra.mxu0 %v82
  %202 = vmatpush.msra.mxu0 %v81
  %203 = vmatpush.msra.mxu0 %v80
  %204 = vmatpush.msra.mxu0 %v79
  %205 = vmatpush.msra.mxu0 %v78
  %206 = vmatpush.msra.mxu0 %v77
  %207 = vmatpush.msra.mxu0 %v76
  %208 = vmatpush.msra.mxu0 %v75
  %209 = vmatmul.f32.gmra.mxu0 %v23
  %v210 = vpop.f32.mrf.mxu0
  %v211 = vadd.f32 %v191, %v210
  %212 = vdwg.mxu0
  %213 = vmatpush.msra.mxu0 %v106
  %214 = vmatpush.msra.mxu0 %v105
  %215 = vmatpush.msra.mxu0 %v104
  %216 = vmatpush.msra.mxu0 %v103
  %217 = vmatpush.msra.mxu0 %v102
  %218 = vmatpush.msra.mxu0 %v101
  %219 = vmatpush.msra.mxu0 %v100
  %220 = vmatpush.msra.mxu0 %v99
  %221 = vmatpush.msra.mxu0 %v98
  %222 = vmatpush.msra.mxu0 %v97
  %223 = vmatpush.msra.mxu0 %v96
  %224 = vmatpush.msra.mxu0 %v95
  %225 = vmatpush.msra.mxu0 %v94
  %226 = vmatpush.msra.mxu0 %v93
  %227 = vmatpush.msra.mxu0 %v92
  %228 = vmatpush.msra.mxu0 %v91
  %229 = vmatmul.f32.gmra.mxu0 %v24
  %v230 = vpop.f32.mrf.mxu0
  %v231 = vadd.f32 %v211, %v230
  %232 = vdwg.mxu0
  %233 = vmatpush.msra.mxu0 %v122
  %234 = vmatpush.msra.mxu0 %v121
  %235 = vmatpush.msra.mxu0 %v120
  %236 = vmatpush.msra.mxu0 %v119
  %237 = vmatpush.msra.mxu0 %v118
  %238 = vmatpush.msra.mxu0 %v117
  %239 = vmatpush.msra.mxu0 %v116
  %240 = vmatpush.msra.mxu0 %v115
  %241 = vmatpush.msra.mxu0 %v114
  %242 = vmatpush.msra.mxu0 %v113
  %243 = vmatpush.msra.mxu0 %v112
  %244 = vmatpush.msra.mxu0 %v111
  %245 = vmatpush.msra.mxu0 %v110
  %246 = vmatpush.msra.mxu0 %v109
  %247 = vmatpush.msra.mxu0 %v108
  %248 = vmatpush.msra.mxu0 %v107
  %249 = vmatmul.f32.gmra.mxu0 %v25
  %v250 = vpop.f32.mrf.mxu0
  %v251 = vadd.f32 %v231, %v250
  %252 = vdwg.mxu0
  %253 = vmatpush.msra.mxu0 0.0
  %254 = vmatpush.msra.mxu0 0.0
  %255 = vmatpush.msra.mxu0 0.0
  %256 = vmatpush.msra.mxu0 0.0
  %257 = vmatpush.msra.mxu0 0.0
  %258 = vmatpush.msra.mxu0 0.0
  %259 = vmatpush.msra.mxu0 0.0
  %260 = vmatpush.msra.mxu0 0.0
  %261 = vmatpush.msra.mxu0 0.0
  %262 = vmatpush.msra.mxu0 0.0
  %263 = vmatpush.msra.mxu0 0.0
  %264 = vmatpush.msra.mxu0 0.0
  %265 = vmatpush.msra.mxu0 0.0
  %266 = vmatpush.msra.mxu0 0.0
  %267 = vmatpush.msra.mxu0 %v124
  %268 = vmatpush.msra.mxu0 %v123
  %269 = vmatmul.f32.gmra.mxu0 %v131
  %v270 = vpop.f32.mrf.mxu0
  %v271 = vadd.f32 %v251, %v270
  %272 = vdwg.mxu0
  %v273 = vmax.f32 %v271, 0.0
  %v274 = vld [vmem:[%s3] sm:$0xff]
  %v275 = vld [vmem:[%s3 + $0x8] sm:$0xff]
  %v276 = vld [vmem:[%s3 + $0x10] sm:$0xff]
  %v277 = vld [vmem:[%s3 + $0x18] sm:$0xff]
  %v278 = vld [vmem:[%s3 + $0x20] sm:$0xff]
  %v279 = vld [vmem:[%s3 + $0x28] sm:$0xff]
  %v280 = vld [vmem:[%s3 + $0x30] sm:$0xff]
  %v281 = vld [vmem:[%s3 + $0x38] sm:$0xff]
  %v282 = vld [vmem:[%s3 + $0x40] sm:$0xff]
  %v283 = vld [vmem:[%s3 + $0x48] sm:$0xff]
  %v284 = vld [vmem:[%s3 + $0x50] sm:$0xff]
  %v285 = vld [vmem:[%s3 + $0x58] sm:$0xff]
  %v286 = vld [vmem:[%s3 + $0x60] sm:$0xf]
  %v287 = vld [vmem:[%s4] sm:$0x1]
  %v289 = vperm.slane %v287, 0
  %vm291 = vcmask 818176
  %v293 = vsel %vm291, %v273, 0
  %vm295 = vcmask 1043456
  %v297 = vsel %vm295, %v286, 0
  %299 = vmatpush.msra.mxu0 0.0
  %300 = vmatpush.msra.mxu0 0.0
  %301 = vmatpush.msra.mxu0 0.0
  %302 = vmatpush.msra.mxu0 %v297
  %303 = vmatpush.msra.mxu0 %v285
  %304 = vmatpush.msra.mxu0 %v284
  %305 = vmatpush.msra.mxu0 %v283
  %306 = vmatpush.msra.mxu0 %v282
  %307 = vmatpush.msra.mxu0 %v281
  %308 = vmatpush.msra.mxu0 %v280
  %309 = vmatpush.msra.mxu0 %v279
  %310 = vmatpush.msra.mxu0 %v278
  %311 = vmatpush.msra.mxu0 %v277
  %312 = vmatpush.msra.mxu0 %v276
  %313 = vmatpush.msra.mxu0 %v275
  %314 = vmatpush.msra.mxu0 %v274
  %315 = vmatmul.f32.gmra.mxu0 %v293
  %v316 = vpop.f32.mrf.mxu0
  %v317 = vadd.f32 %v289, %v316
  %318 = vdwg.mxu0
  %vm319 = vcmask 80896
  %320 = vst.msk [vmem:[%s5] sm:$0xff] %vm319, %v317
  // Predicated region
  $region22: #{network_forward.1} parent=0 // pred_check
    _
  $region23: #{network_forward.1} parent=0 // pred_check_branch
    %322 = sbr.rel (0) target = $region25
  $region24: #{network_forward.1} parent=0 // pred_region
    _
  $region25: #{network_forward.1} parent=0 // pred_fallthru
    _
  // Predicated region
  $region26: #{network_forward.1} parent=0 // pred_check
    _
  $region27: #{network_forward.1} parent=0 // pred_check_branch
    %324 = sbr.rel (0) target = $region29
  $region28: #{network_forward.1} parent=0 // pred_region
    _
  $region29: #{network_forward.1} parent=0 // pred_fallthru
    _

</llo_original>
